<compile_context>
chip_gen: v7x
topology: tpu7x:2x2x1
jax: 0.10.0
libtpu: 0.0.40
codegen_flags: <defaults>
</compile_context>

<pallas_src>
import jax
import jax.numpy as jnp
from jax.experimental import pallas as pl
from jax.experimental.pallas import tpu as pltpu


def _identity_copy_kernel(x_ref, o_ref):
    # Entire forward pass of Identity: a straight VMEM tile copy.
    o_ref[...] = x_ref[...]


def _sublane_multiple(dtype) -> int:
    # Sub-32-bit dtypes pack along sublanes: block second-to-last dim should be
    # a multiple of 8 (32-bit), 16 (16-bit), 32 (8-bit) to avoid packed
    # partial-vreg stores.
    itemsize = jnp.dtype(dtype).itemsize
    return max(8, 32 // max(itemsize, 1))


def _pick_lane_dense_cols(total: int, max_cols: int = 4096) -> int:
    """Largest multiple of 128 that divides `total`, capped at `max_cols`.
    Returns 0 if no multiple of 128 divides `total`."""
    upper = min(total, max_cols)
    upper -= upper % 128
    for c in range(upper, 0, -128):
        if total % c == 0:
            return c
    return 0


@jax.jit
def identity_pallas(x: jax.Array) -> jax.Array:
    """Identity forward as an explicit Pallas TPU copy kernel."""
    if x.ndim == 0 or x.size == 0:
        # Nothing to tile; Identity of a scalar/empty is just the value.
        return x

    orig_shape = x.shape
    dtype = x.dtype
    itemsize = jnp.dtype(dtype).itemsize
    total = x.size

    # Lane-dense flatten: (rows, cols) with cols a multiple of 128 when possible.
    cols = _pick_lane_dense_cols(total)
    if cols == 0:
        # No lane-dense factorization (odd/prime sizes): single full-extent
        # block view. Correct, only sensible for small tensors.
        # TODO(synk): pad-to-128 path for large ragged sizes.
        cols = total
    rows = total // cols
    x2 = x.reshape(rows, cols)

    # Byte-budgeted row tile (~2 MiB per block), dtype-aware sublane alignment.
    # Ragged last block is handled by the cdiv grid (no divisibility loop).
    target_block_bytes = 2 * 1024 * 1024
    sub = _sublane_multiple(dtype)
    tile_rows = max(target_block_bytes // (cols * itemsize), 1)
    tile_rows = min(tile_rows, rows)
    if tile_rows >= sub:
        tile_rows -= tile_rows % sub
    grid = (pl.cdiv(rows, tile_rows),)

    y2 = pl.pallas_call(
        _identity_copy_kernel,
        out_shape=jax.ShapeDtypeStruct((rows, cols), dtype),
        grid_spec=pltpu.PrefetchScalarGridSpec(
            num_scalar_prefetch=0,
            grid=grid,
            in_specs=[pl.BlockSpec((tile_rows, cols), lambda i: (i, 0))],
            out_specs=pl.BlockSpec((tile_rows, cols), lambda i: (i, 0)),
        ),
        # Output aliases the input buffer: no second full-size HBM allocation,
        # and XLA may elide the copy entirely when the input is donatable.
        input_output_aliases={0: 0},
        compiler_params=pltpu.CompilerParams(
            # Load-bearing only on v7x (2 TCs share HBM); no-op on v5e/v6e.
            dimension_semantics=("parallel",),
        ),
    )(x2)

    return y2.reshape(orig_shape)


def identity(x: jax.Array, *, force_kernel: bool = False) -> jax.Array:
    """Identity forward pass.

    Default: return x (zero data movement — the right answer for Identity).
    force_kernel=True: run the lane-dense, buffer-aliased Pallas copy kernel.
    """
    if not force_kernel:
        return x
    return identity_pallas(x)


if __name__ == "__main__":
    key = jax.random.PRNGKey(0)
    # Small NCHW input consistent with a ResNet-style pipeline.
    x = jax.random.normal(key, (2, 4, 16, 16), dtype=jnp.float32)

    # Zero-cost path (the real Identity).
    y_fast = identity(x)
    assert y_fast.shape == x.shape and y_fast.dtype == x.dtype
    assert bool(jnp.array_equal(y_fast, x))

    # Pallas kernel path (lane-dense aliased copy).
    y = identity(x, force_kernel=True)
    y = jax.block_until_ready(y)
    assert y.shape == x.shape, (y.shape, x.shape)
    assert y.dtype == x.dtype, (y.dtype, x.dtype)
    assert bool(jnp.array_equal(y, x)), "Identity kernel output mismatch (f32)"

    # Exercise the dtype-aware sublane path with a bf16 input.
    xb = x.astype(jnp.bfloat16)
    yb = jax.block_until_ready(identity(xb, force_kernel=True))
    assert yb.shape == xb.shape and yb.dtype == xb.dtype
    assert bool(jnp.array_equal(yb, xb)), "Identity kernel output mismatch (bf16)"

    print("KERNEL_OK")
</pallas_src>

<mosaic_0001>
module attributes {stable_mosaic.version = 11 : i64} {
  func.func @_identity_copy_kernel(%arg0: i32, %arg1: memref<1x2048xf32, #tpu.memory_space<vmem>>, %arg2: memref<1x2048xf32, #tpu.memory_space<vmem>>) attributes {dimension_semantics = [#tpu.dimension_semantics<parallel>], iteration_bounds = array<i64: 1>, scalar_prefetch = 0 : i64, scratch_operands = 0 : i64, tpu.core_type = #tpu.core_type<tc>, window_params = [{transform_indices = @transform_0, window_bounds = array<i64: 1, 2048>}, {transform_indices = @transform_1, window_bounds = array<i64: 1, 2048>}]} {
    %c0 = arith.constant 0 : index
    %c0_0 = arith.constant 0 : index
    %0 = vector.load %arg1[%c0, %c0_0] : memref<1x2048xf32, #tpu.memory_space<vmem>>, vector<1x2048xf32>
    %c0_1 = arith.constant 0 : index
    %c0_2 = arith.constant 0 : index
    %1 = vector.load %arg2[%c0_1, %c0_2] : memref<1x2048xf32, #tpu.memory_space<vmem>>, vector<1x2048xf32>
    tpu.vector_store %arg2[%c0_1, %c0_2], %0 {strides = array<i32>} : memref<1x2048xf32, #tpu.memory_space<vmem>>, vector<1x2048xf32>,
    return
  }
  func.func @transform_0(%arg0: i32) -> (i32, i32) {
    %c0_i32 = arith.constant 0 : i32
    %c0_i32_0 = arith.constant 0 : i32
    return %arg0, %c0_i32 : i32, i32
  }
  func.func @transform_1(%arg0: i32) -> (i32, i32) {
    %c0_i32 = arith.constant 0 : i32
    %c0_i32_0 = arith.constant 0 : i32
    return %arg0, %c0_i32 : i32, i32
  }
}

</mosaic_0001>

<llo_original>
// kernel: identity_pallas.1
$region0: #{identity_pallas.1}
  #allocation0 [shape = 'u32[]', space=smem, size = 0x4, offset = 0x4, fixed_abs, tag = 'smem constant byte address 0x4 - core index']
  #allocation1 [shape = 'u32[144,128]{1,0:T(1,128)}', space=vmem, size = 0x12000, scoped, tag = 'internal scratch']
  %s0 = inlined_call_operand.vmem [shape: f32[1,2048], index: 0, kind: input, shape index: {}, may-alias: {0,1}]
  %s1 = inlined_call_operand.vmem [shape: f32[1,2048], index: 1, kind: output, shape index: {}, may-alias: {0,1}]
  %s2 = sld [smem:[#allocation0]]
  $region14: #{identity_pallas.1} parent=0
    _
  %s4 = ssub.s32 1, %s2
  %s5 = scalar_select 0, %s4, %s2
  // Predicated region
  $region2: #{identity_pallas.1} parent=0 // pred_check
    _
  $region3: #{identity_pallas.1} parent=0 // pred_check_branch
    %7 = sbr.rel (0) target = $region5
  $region4: #{identity_pallas.1} parent=0 // pred_region
    _
  $region5: #{identity_pallas.1} parent=0 // pred_fallthru
    _
  %v8 = vld [vmem:[%s0] sm:$0xff]
  %v9 = vld [vmem:[%s0 + $0x8] sm:$0xff]
  %10 = vst [vmem:[%s1] sm:$0xff] %v8
  %11 = vst [vmem:[%s1 + $0x8] sm:$0xff] %v9
  // Predicated region
  $region6: #{identity_pallas.1} parent=0 // pred_check
    _
  $region7: #{identity_pallas.1} parent=0 // pred_check_branch
    %13 = sbr.rel (0) target = $region9
  $region8: #{identity_pallas.1} parent=0 // pred_region
    _
  $region9: #{identity_pallas.1} parent=0 // pred_fallthru
    _
  // Predicated region
  $region10: #{identity_pallas.1} parent=0 // pred_check
    _
  $region11: #{identity_pallas.1} parent=0 // pred_check_branch
    %15 = sbr.rel (0) target = $region13
  $region12: #{identity_pallas.1} parent=0 // pred_region
    _
  $region13: #{identity_pallas.1} parent=0 // pred_fallthru
    _

</llo_original>
